<compile_context>
chip_gen: v7x
topology: tpu7x:2x2x1
jax: 0.10.0
libtpu: 0.0.40
codegen_flags: <defaults>
</compile_context>

<pallas_src>
import jax
import jax.numpy as jnp
from jax.experimental import pallas as pl
from jax.experimental.pallas import tpu as pltpu

NUM_CLASSES = 5
NUM_CLASSES_PAD = 8          # pad class dim to a full f32 sublane group
C_IN = 64                    # num_input_feature (module default)
C_HID = 64                   # stand-in hidden width for the RegSeg decoder
N = 2                        # batch
H = W = 16                   # small spatial stand-in
HW = H * W                   # 256 lanes per batch element (multiple of 128)


# ---------------------------------------------------------------------------
# Pallas kernel: per-batch 1x1-conv stem + bias + ReLU + classifier head
# ---------------------------------------------------------------------------
def _regseg_kernel(x_ref, w1_ref, b1_ref, wh_ref, bh_ref, out_ref):
    # stem: 1x1 conv (C_IN -> C_HID), f32 MXU accumulation, VPU bias add + ReLU
    h = jnp.dot(w1_ref[...], x_ref[...], preferred_element_type=jnp.float32)
    h = jnp.maximum(h + b1_ref[...], 0.0)
    # head: 1x1 conv C_HID -> NUM_CLASSES (padded to 8 sublanes), bias on f32 output
    out_ref[...] = (
        jnp.dot(wh_ref[...], h.astype(jnp.bfloat16),
                preferred_element_type=jnp.float32)
        + bh_ref[...])


@jax.jit
def _run_kernel(x_cm, w1_bf, b1_col, wh_pad, bh_pad):
    flops = 2 * N * HW * (C_IN * C_HID + C_HID * NUM_CLASSES_PAD)
    bytes_accessed = (x_cm.size * 2 + w1_bf.size * 2 + wh_pad.size * 2
                      + b1_col.size * 4 + bh_pad.size * 4
                      + N * NUM_CLASSES_PAD * HW * 4)
    return pl.pallas_call(
        _regseg_kernel,
        out_shape=jax.ShapeDtypeStruct((N, NUM_CLASSES_PAD, HW), jnp.float32),
        grid=(N,),
        in_specs=[
            pl.BlockSpec((None, C_IN, HW), lambda b: (b, 0, 0)),
            pl.BlockSpec((C_HID, C_IN), lambda b: (0, 0)),
            pl.BlockSpec((C_HID, 1), lambda b: (0, 0)),
            pl.BlockSpec((NUM_CLASSES_PAD, C_HID), lambda b: (0, 0)),
            pl.BlockSpec((NUM_CLASSES_PAD, 1), lambda b: (0, 0)),
        ],
        out_specs=pl.BlockSpec((None, NUM_CLASSES_PAD, HW), lambda b: (b, 0, 0)),
        compiler_params=pltpu.CompilerParams(
            dimension_semantics=("parallel",),
            vmem_limit_bytes=16 * 1024 * 1024),
        cost_estimate=pl.CostEstimate(flops=flops, transcendentals=0,
                                      bytes_accessed=bytes_accessed),
    )(x_cm, w1_bf, b1_col, wh_pad, bh_pad)


# ---------------------------------------------------------------------------
# Forward pass: Traver_Completion.forward(x) -> {'bev_preds': regseg(x)}
# ---------------------------------------------------------------------------
def traver_completion_forward(x, params):
    """x: (N, C_IN, H, W) float32 NCHW.  Returns {'bev_preds': (N, NUM_CLASSES, H, W)}."""
    w1, b1, wh, bh = params
    n, c, h, w = x.shape
    assert (n, c, h, w) == (N, C_IN, H, W)

    # channel-major (C, HW) per batch, single bf16 cast; no concat / ones-row.
    x_cm = x.reshape(n, c, h * w).astype(jnp.bfloat16)              # (N, C_IN, HW)

    w1_bf = w1.astype(jnp.bfloat16)                                 # (C_HID, C_IN)
    b1_col = b1.reshape(C_HID, 1).astype(jnp.float32)               # (C_HID, 1)
    wh_pad = jnp.concatenate(
        [wh, jnp.zeros((NUM_CLASSES_PAD - NUM_CLASSES, C_HID), wh.dtype)],
        axis=0).astype(jnp.bfloat16)                                # (8, C_HID)
    bh_pad = jnp.concatenate(
        [bh.reshape(NUM_CLASSES, 1),
         jnp.zeros((NUM_CLASSES_PAD - NUM_CLASSES, 1), bh.dtype)],
        axis=0).astype(jnp.float32)                                 # (8, 1)

    out = _run_kernel(x_cm, w1_bf, b1_col, wh_pad, bh_pad)
    out = out[:, :NUM_CLASSES].reshape(n, NUM_CLASSES, h, w)
    return {"bev_preds": out}


# ---------------------------------------------------------------------------
# Pure-JAX reference (same bf16 quantization of operands) for a correctness check
# ---------------------------------------------------------------------------
def _reference(x, params):
    w1, b1, wh, bh = params
    xq = x.astype(jnp.bfloat16).astype(jnp.float32).reshape(N, C_IN, HW)
    w1q = w1.astype(jnp.bfloat16).astype(jnp.float32)
    whq = wh.astype(jnp.bfloat16).astype(jnp.float32)
    h = jnp.maximum(jnp.einsum("oc,ncp->nop", w1q, xq) + b1[None, :, None], 0.0)
    hq = h.astype(jnp.bfloat16).astype(jnp.float32)
    out = jnp.einsum("oc,ncp->nop", whq, hq) + bh[None, :, None]
    return out.reshape(N, NUM_CLASSES, H, W)


# ---------------------------------------------------------------------------
if __name__ == "__main__":
    key = jax.random.PRNGKey(0)
    k = jax.random.split(key, 5)

    x = jax.random.normal(k[0], (N, C_IN, H, W), jnp.float32) * 0.1
    w1 = jax.random.normal(k[1], (C_HID, C_IN), jnp.float32) * 0.05
    b1 = jax.random.normal(k[2], (C_HID,), jnp.float32) * 0.01
    wh = jax.random.normal(k[3], (NUM_CLASSES, C_HID), jnp.float32) * 0.05
    bh = jax.random.normal(k[4], (NUM_CLASSES,), jnp.float32) * 0.01
    params = (w1, b1, wh, bh)

    ret = traver_completion_forward(x, params)
    out = jax.block_until_ready(ret["bev_preds"])
    assert out.shape == (N, NUM_CLASSES, H, W)

    ref = _reference(x, params)
    err = float(jnp.max(jnp.abs(out - ref)))
    assert err < 5e-3, f"max abs err {err}"
    print("KERNEL_OK")
</pallas_src>

<mosaic_0001>
module attributes {stable_mosaic.version = 11 : i64} {
  func.func @_regseg_kernel(%arg0: i32, %arg1: memref<1x64x256xbf16, #tpu.memory_space<vmem>>, %arg2: memref<64x64xbf16, #tpu.memory_space<vmem>>, %arg3: memref<64x1xf32, #tpu.memory_space<vmem>>, %arg4: memref<8x64xbf16, #tpu.memory_space<vmem>>, %arg5: memref<8x1xf32, #tpu.memory_space<vmem>>, %arg6: memref<1x8x256xf32, #tpu.memory_space<vmem>>) attributes {dimension_semantics = [#tpu.dimension_semantics<parallel>], iteration_bounds = array<i64: 2>, scalar_prefetch = 0 : i64, scratch_operands = 0 : i64, tpu.core_type = #tpu.core_type<tc>, window_params = [{transform_indices = @transform_0, window_bounds = array<i64: 1, 64, 256>}, {pipeline_mode = #tpu.pipeline_mode<synchronous>, transform_indices = @transform_1, window_bounds = array<i64: 64, 64>}, {pipeline_mode = #tpu.pipeline_mode<synchronous>, transform_indices = @transform_2, window_bounds = array<i64: 64, 1>}, {pipeline_mode = #tpu.pipeline_mode<synchronous>, transform_indices = @transform_3, window_bounds = array<i64: 8, 64>}, {pipeline_mode = #tpu.pipeline_mode<synchronous>, transform_indices = @transform_4, window_bounds = array<i64: 8, 1>}, {transform_indices = @transform_5, window_bounds = array<i64: 1, 8, 256>}]} {
    %c0 = arith.constant 0 : index
    %c0_0 = arith.constant 0 : index
    %0 = vector.load %arg2[%c0, %c0_0] : memref<64x64xbf16, #tpu.memory_space<vmem>>, vector<64x64xbf16>
    %c0_1 = arith.constant 0 : index
    %c0_2 = arith.constant 0 : index
    %c0_3 = arith.constant 0 : index
    %1 = vector.load %arg1[%c0_1, %c0_2, %c0_3] : memref<1x64x256xbf16, #tpu.memory_space<vmem>>, vector<1x64x256xbf16>
    %2 = vector.shape_cast %1 : vector<1x64x256xbf16> to vector<64x256xbf16>
    %cst = arith.constant dense<0.000000e+00> : vector<64x256xf32>
    %3 = tpu.matmul %0, %2, %cst {dimension_numbers = #tpu.dot_dimension_numbers<[1], [0], [0], [1], [0, 0, 1, 1], [], []>} : vector<64x64xbf16>, vector<64x256xbf16>, vector<64x256xf32> -> vector<64x256xf32>
    %c0_4 = arith.constant 0 : index
    %c0_5 = arith.constant 0 : index
    %4 = vector.load %arg3[%c0_4, %c0_5] : memref<64x1xf32, #tpu.memory_space<vmem>>, vector<64x1xf32>
    %5 = vector.broadcast %4 : vector<64x1xf32> to vector<64x256xf32>
    %6 = arith.addf %3, %5 : vector<64x256xf32>
    %cst_6 = arith.constant 0.000000e+00 : f32
    %7 = vector.broadcast %cst_6 : f32 to vector<64x256xf32>
    %8 = arith.maximumf %6, %7 : vector<64x256xf32>
    %c0_7 = arith.constant 0 : index
    %c0_8 = arith.constant 0 : index
    %9 = vector.load %arg4[%c0_7, %c0_8] : memref<8x64xbf16, #tpu.memory_space<vmem>>, vector<8x64xbf16>
    %10 = arith.truncf %8 : vector<64x256xf32> to vector<64x256xbf16>
    %cst_9 = arith.constant dense<0.000000e+00> : vector<8x256xf32>
    %11 = tpu.matmul %9, %10, %cst_9 {dimension_numbers = #tpu.dot_dimension_numbers<[1], [0], [0], [1], [0, 0, 1, 1], [], []>} : vector<8x64xbf16>, vector<64x256xbf16>, vector<8x256xf32> -> vector<8x256xf32>
    %c0_10 = arith.constant 0 : index
    %c0_11 = arith.constant 0 : index
    %12 = vector.load %arg5[%c0_10, %c0_11] : memref<8x1xf32, #tpu.memory_space<vmem>>, vector<8x1xf32>
    %13 = vector.broadcast %12 : vector<8x1xf32> to vector<8x256xf32>
    %14 = arith.addf %11, %13 : vector<8x256xf32>
    %c0_12 = arith.constant 0 : index
    %c0_13 = arith.constant 0 : index
    %c0_14 = arith.constant 0 : index
    %15 = vector.load %arg6[%c0_12, %c0_13, %c0_14] : memref<1x8x256xf32, #tpu.memory_space<vmem>>, vector<1x8x256xf32>
    %16 = vector.shape_cast %15 : vector<1x8x256xf32> to vector<8x256xf32>
    %17 = vector.shape_cast %14 : vector<8x256xf32> to vector<1x8x256xf32>
    tpu.vector_store %arg6[%c0_12, %c0_13, %c0_14], %17 {strides = array<i32>} : memref<1x8x256xf32, #tpu.memory_space<vmem>>, vector<1x8x256xf32>,
    return
  }
  func.func @transform_0(%arg0: i32) -> (i32, i32, i32) {
    %c0_i32 = arith.constant 0 : i32
    %c0_i32_0 = arith.constant 0 : i32
    %c0_i32_1 = arith.constant 0 : i32
    return %arg0, %c0_i32, %c0_i32_0 : i32, i32, i32
  }
  func.func @transform_1(%arg0: i32) -> (i32, i32) {
    %c0_i32 = arith.constant 0 : i32
    %c0_i32_0 = arith.constant 0 : i32
    %c0_i32_1 = arith.constant 0 : i32
    return %c0_i32, %c0_i32_0 : i32, i32
  }
  func.func @transform_2(%arg0: i32) -> (i32, i32) {
    %c0_i32 = arith.constant 0 : i32
    %c0_i32_0 = arith.constant 0 : i32
    %c0_i32_1 = arith.constant 0 : i32
    return %c0_i32, %c0_i32_0 : i32, i32
  }
  func.func @transform_3(%arg0: i32) -> (i32, i32) {
    %c0_i32 = arith.constant 0 : i32
    %c0_i32_0 = arith.constant 0 : i32
    %c0_i32_1 = arith.constant 0 : i32
    return %c0_i32, %c0_i32_0 : i32, i32
  }
  func.func @transform_4(%arg0: i32) -> (i32, i32) {
    %c0_i32 = arith.constant 0 : i32
    %c0_i32_0 = arith.constant 0 : i32
    %c0_i32_1 = arith.constant 0 : i32
    return %c0_i32, %c0_i32_0 : i32, i32
  }
  func.func @transform_5(%arg0: i32) -> (i32, i32, i32) {
    %c0_i32 = arith.constant 0 : i32
    %c0_i32_0 = arith.constant 0 : i32
    %c0_i32_1 = arith.constant 0 : i32
    return %arg0, %c0_i32, %c0_i32_0 : i32, i32, i32
  }
}

</mosaic_0001>

<llo_original>
// kernel: _run_kernel.1
$region0: #{_run_kernel.1}
  #allocation0 [shape = 'u32[]', space=smem, size = 0x4, offset = 0x4, fixed_abs, tag = 'smem constant byte address 0x4 - core index']
  #allocation1 [shape = 'u32[144,128]{1,0:T(1,128)}', space=vmem, size = 0x12000, scoped, tag = 'internal scratch']
  %s0 = inlined_call_operand.hbm [shape: bf16[2,64,256], index: 0, kind: input, shape index: {}]
  %s1 = inlined_call_operand.vmem [shape: bf16[64,64], index: 1, kind: input, shape index: {}]
  %s2 = inlined_call_operand.vmem [shape: f32[64,1], index: 2, kind: input, shape index: {}]
  %s3 = inlined_call_operand.vmem [shape: bf16[8,64], index: 3, kind: input, shape index: {}]
  %s4 = inlined_call_operand.vmem [shape: f32[8,1], index: 4, kind: input, shape index: {}]
  %s5 = inlined_call_operand.hbm [shape: f32[2,8,256], index: 5, kind: output, shape index: {}]
  %s6 = sld [smem:[#allocation0]]
  $region57: #{_run_kernel.1} parent=0
    _
  %s8 = ssub.s32 1, %s6
  %s9 = scalar_select 0, %s8, %s6
  $region1: #{_run_kernel.1} parent=0
    #allocation2 [shape = 'u8[65536]{0}', space=vmem, size = 0x10000, scoped, tag = 'input window, operand 0']
    #allocation3 [shape = 's32[2]{0}', space=sflag, size = 0x8, scoped, tag = 'scoped memory for _run_kernel.1']
    #allocation4 [shape = 's32[2]{0}', space=sflag, size = 0x8, scoped, tag = 'scoped memory for _run_kernel.1']
    #allocation5 [shape = 'u8[16384]{0}', space=vmem, size = 0x4000, scoped, tag = 'output window, operand 0']
    %10 = vsyncpa [#allocation3], 0
    %s11 = scalar_lea.sflag [#allocation3], 1
    %12 = vsyncpa %s11, 0
    %13 = vsyncpa [#allocation4], 0
    %s14 = scalar_lea.sflag [#allocation4], 1
    %15 = vsyncpa %s14, 0
    loop: start=0, step=1, limit=4
    $region2: #{_run_kernel.1} parent=1 // loop_pre_header
      _
    $region3: #{_run_kernel.1} parent=1 // loop_header
      %s17 = sphi 0, %s21
      %p18 = scmp.ge.s32.totalorder %s17, 4
      %s27 = sphi 0, %s29
      %s30 = sphi 0, %s27
      %s31 = sphi 0, %s30
      %s47 = sphi 0, %s31
      %s51 = sphi 0, %s51
      %s53 = sphi 0, %s51
      %s54 = sphi 0, %s53
      %s68 = sphi 0, %s54
      %s72 = sphi 0, %s72
      %s74 = sphi 0, %s72
      %s75 = sphi 0, %s74
      %s89 = sphi 0, %s75
      %s93 = sphi 0, %s93
      %s95 = sphi 0, %s93
      %s96 = sphi 0, %s95
      %s110 = sphi 0, %s96
      %s114 = sphi 0, %s114
      %s116 = sphi 0, %s114
      %s117 = sphi 0, %s116
      %s131 = sphi 0, %s117
      %s137 = sphi 0, %s139
      %s140 = sphi 0, %s137
      %s141 = sphi 0, %s140
      %s157 = sphi 0, %s141
    $region4: #{_run_kernel.1} parent=1 // loop_header_branch
      %20 = sbr.rel (%p18) target = $region8
    $region5: #{_run_kernel.1} parent=1 // loop_body
      %s22 = ssub.s32 %s17, 1
      %s23 = ssub.s32 %s17, 2
      %s24 = sadd.s32 %s17, 1
      %s25 = ssub.s32 %s17, %s24
      %p26 = scmp.eq.s32.totalorder %s25, 0
      %s28 = sadd.s32 %s27, 1
      %s29 = scalar_select %p26, %s27, %s28
      %p32 = pneg %p26
      %p33 = scmp.eq.s32.totalorder %s17, 1
      %p34 = por %p32, %p33
      %p35 = scmp.ne.s32.totalorder %s27, %s30
      %p36 = scmp.eq.s32.totalorder %s17, 0
      %p37 = por %p35, %p36
      %p38 = scmp.ne.s32.totalorder %s27, %s30
      %p39 = scmp.eq.s32.totalorder %s22, 1
      %p40 = por %p38, %p39
      %p41 = scmp.ne.s32.totalorder %s30, %s31
      %p42 = scmp.eq.s32.totalorder %s22, 0
      %p43 = por %p41, %p42
      %p44 = scmp.ne.s32.totalorder %s30, %s31
      %p45 = scmp.eq.s32.totalorder %s23, 1
      %p46 = por %p44, %p45
      %p48 = scmp.ne.s32.totalorder %s31, %s47
      %p49 = scmp.eq.s32.totalorder %s23, 0
      %p50 = por %p48, %p49
      %s52 = sadd.s32 %s51, 1
      %p55 = scmp.eq.s32.totalorder %s17, 1
      %p56 = scmp.ne.s32.totalorder %s51, %s53
      %p57 = scmp.eq.s32.totalorder %s17, 0
      %p58 = por %p56, %p57
      %p59 = scmp.ne.s32.totalorder %s51, %s53
      %p60 = scmp.eq.s32.totalorder %s22, 1
      %p61 = por %p59, %p60
      %p62 = scmp.ne.s32.totalorder %s53, %s54
      %p63 = scmp.eq.s32.totalorder %s22, 0
      %p64 = por %p62, %p63
      %p65 = scmp.ne.s32.totalorder %s53, %s54
      %p66 = scmp.eq.s32.totalorder %s23, 1
      %p67 = por %p65, %p66
      %p69 = scmp.ne.s32.totalorder %s54, %s68
      %p70 = scmp.eq.s32.totalorder %s23, 0
      %p71 = por %p69, %p70
      %s73 = sadd.s32 %s72, 1
      %p76 = scmp.eq.s32.totalorder %s17, 1
      %p77 = scmp.ne.s32.totalorder %s72, %s74
      %p78 = scmp.eq.s32.totalorder %s17, 0
      %p79 = por %p77, %p78
      %p80 = scmp.ne.s32.totalorder %s72, %s74
      %p81 = scmp.eq.s32.totalorder %s22, 1
      %p82 = por %p80, %p81
      %p83 = scmp.ne.s32.totalorder %s74, %s75
      %p84 = scmp.eq.s32.totalorder %s22, 0
      %p85 = por %p83, %p84
      %p86 = scmp.ne.s32.totalorder %s74, %s75
      %p87 = scmp.eq.s32.totalorder %s23, 1
      %p88 = por %p86, %p87
      %p90 = scmp.ne.s32.totalorder %s75, %s89
      %p91 = scmp.eq.s32.totalorder %s23, 0
      %p92 = por %p90, %p91
      %s94 = sadd.s32 %s93, 1
      %p97 = scmp.eq.s32.totalorder %s17, 1
      %p98 = scmp.ne.s32.totalorder %s93, %s95
      %p99 = scmp.eq.s32.totalorder %s17, 0
      %p100 = por %p98, %p99
      %p101 = scmp.ne.s32.totalorder %s93, %s95
      %p102 = scmp.eq.s32.totalorder %s22, 1
      %p103 = por %p101, %p102
      %p104 = scmp.ne.s32.totalorder %s95, %s96
      %p105 = scmp.eq.s32.totalorder %s22, 0
      %p106 = por %p104, %p105
      %p107 = scmp.ne.s32.totalorder %s95, %s96
      %p108 = scmp.eq.s32.totalorder %s23, 1
      %p109 = por %p107, %p108
      %p111 = scmp.ne.s32.totalorder %s96, %s110
      %p112 = scmp.eq.s32.totalorder %s23, 0
      %p113 = por %p111, %p112
      %s115 = sadd.s32 %s114, 1
      %p118 = scmp.eq.s32.totalorder %s17, 1
      %p119 = scmp.ne.s32.totalorder %s114, %s116
      %p120 = scmp.eq.s32.totalorder %s17, 0
      %p121 = por %p119, %p120
      %p122 = scmp.ne.s32.totalorder %s114, %s116
      %p123 = scmp.eq.s32.totalorder %s22, 1
      %p124 = por %p122, %p123
      %p125 = scmp.ne.s32.totalorder %s116, %s117
      %p126 = scmp.eq.s32.totalorder %s22, 0
      %p127 = por %p125, %p126
      %p128 = scmp.ne.s32.totalorder %s116, %s117
      %p129 = scmp.eq.s32.totalorder %s23, 1
      %p130 = por %p128, %p129
      %p132 = scmp.ne.s32.totalorder %s117, %s131
      %p133 = scmp.eq.s32.totalorder %s23, 0
      %p134 = por %p132, %p133
      %s135 = ssub.s32 %s17, %s24
      %p136 = scmp.eq.s32.totalorder %s135, 0
      %s138 = sadd.s32 %s137, 1
      %s139 = scalar_select %p136, %s137, %s138
      %p142 = pneg %p136
      %p143 = scmp.eq.s32.totalorder %s17, 1
      %p144 = por %p142, %p143
      %p145 = scmp.ne.s32.totalorder %s137, %s140
      %p146 = scmp.eq.s32.totalorder %s17, 0
      %p147 = por %p145, %p146
      %p148 = scmp.ne.s32.totalorder %s137, %s140
      %p149 = scmp.eq.s32.totalorder %s22, 1
      %p150 = por %p148, %p149
      %p151 = scmp.ne.s32.totalorder %s140, %s141
      %p152 = scmp.eq.s32.totalorder %s22, 0
      %p153 = por %p151, %p152
      %p154 = scmp.ne.s32.totalorder %s140, %s141
      %p155 = scmp.eq.s32.totalorder %s23, 1
      %p156 = por %p154, %p155
      %p158 = scmp.ne.s32.totalorder %s141, %s157
      %p159 = scmp.eq.s32.totalorder %s23, 0
      %p160 = por %p158, %p159
      %p161 = scmp.le.s32.totalorder 1, %s17
      %p162 = scmp.lt.s32.totalorder %s17, 3
      %p163 = pnand %p161, %p162
      %p164 = pneg %p163
      // Predicated region
      $region9: #{_run_kernel.1} parent=5 // pred_check
        _
      $region10: #{_run_kernel.1} parent=5 // pred_check_branch
        %166 = sbr.rel (%p163) target = $region12
      $region11: #{_run_kernel.1} parent=5 // pred_region
        %s167 = ssub.s32 %s17, 1
        // Predicated region
        $region13: #{_run_kernel.1} parent=11 // pred_check
          %p168 = pneg %p64
        $region14: #{_run_kernel.1} parent=11 // pred_check_branch
          %170 = sbr.rel (%p168) target = $region16
        $region15: #{_run_kernel.1} parent=11 // pred_region
          _
        $region16: #{_run_kernel.1} parent=11 // pred_fallthru
          _
        // Predicated region
        $region17: #{_run_kernel.1} parent=11 // pred_check
          %p171 = pneg %p85
        $region18: #{_run_kernel.1} parent=11 // pred_check_branch
          %173 = sbr.rel (%p171) target = $region20
        $region19: #{_run_kernel.1} parent=11 // pred_region
          _
        $region20: #{_run_kernel.1} parent=11 // pred_fallthru
          _
        // Predicated region
        $region21: #{_run_kernel.1} parent=11 // pred_check
          %p174 = pneg %p106
        $region22: #{_run_kernel.1} parent=11 // pred_check_branch
          %176 = sbr.rel (%p174) target = $region24
        $region23: #{_run_kernel.1} parent=11 // pred_region
          _
        $region24: #{_run_kernel.1} parent=11 // pred_fallthru
          _
        // Predicated region
        $region25: #{_run_kernel.1} parent=11 // pred_check
          %p177 = pneg %p127
        $region26: #{_run_kernel.1} parent=11 // pred_check_branch
          %179 = sbr.rel (%p177) target = $region28
        $region27: #{_run_kernel.1} parent=11 // pred_region
          _
        $region28: #{_run_kernel.1} parent=11 // pred_fallthru
          _
      $region12: #{_run_kernel.1} parent=5 // pred_fallthru
        _
      %p180 = scmp.lt.s32.totalorder %s17, 2
      // Predicated region
      $region29: #{_run_kernel.1} parent=5 // pred_check
        %p181 = pneg %p180
      $region30: #{_run_kernel.1} parent=5 // pred_check_branch
        %183 = sbr.rel (%p181) target = $region32
      $region31: #{_run_kernel.1} parent=5 // pred_region
        // Predicated region
        $region33: #{_run_kernel.1} parent=31 // pred_check
          %p184 = pneg %p37
        $region34: #{_run_kernel.1} parent=31 // pred_check_branch
          %186 = sbr.rel (%p184) target = $region36
        $region35: #{_run_kernel.1} parent=31 // pred_region
          %s187 = sand.u32 %s27, 1
          %s188 = scalar_lea.sflag [#allocation3], %s187
          %s189 = sand.u32 %s27, 1
          %s190 = smul.addr %s189, 64
          %s191 = scalar_lea.vmem [#allocation2], %s190
          %s193 = ssub.s32 1024, 1024
          %194 = vsyncadd %s188, %s193
          %s195 = smul.addr %s17, 16
          %s196 = smul.addr %s195, 64
          %s197 = scalar_lea.hbm %s0, %s196
          %s198 = sshll.u32 %s191, 4
          %s199 = int_to_ptr.vmem [resolvable:$true] %s198
          %204 = dma.hbm_to_vmem [thread:$0]  %s197, 1024, %s199, %s188, 128, 128, 8
        $region36: #{_run_kernel.1} parent=31 // pred_fallthru
          _
      $region32: #{_run_kernel.1} parent=5 // pred_fallthru
        _
      %p205 = scmp.le.s32.totalorder 1, %s17
      %p206 = scmp.lt.s32.totalorder %s17, 3
      %p207 = pnand %p205, %p206
      %p208 = pneg %p207
      // Predicated region
      $region37: #{_run_kernel.1} parent=5 // pred_check
        _
      $region38: #{_run_kernel.1} parent=5 // pred_check_branch
        %210 = sbr.rel (%p207) target = $region40
      $region39: #{_run_kernel.1} parent=5 // pred_region
        %s211 = ssub.s32 %s17, 1
        %s212 = sand.u32 %s30, 1
        %s213 = scalar_lea.sflag [#allocation3], %s212
        %s214 = sand.u32 %s30, 1
        %s215 = smul.addr %s214, 64
        %s216 = scalar_lea.vmem [#allocation2], %s215
        // Predicated region
        $region41: #{_run_kernel.1} parent=39 // pred_check
          %p217 = pneg %p43
        $region42: #{_run_kernel.1} parent=39 // pred_check_branch
          %219 = sbr.rel (%p217) target = $region44
        $region43: #{_run_kernel.1} parent=39 // pred_region
          %220 = dma.done %s213, 1024
        $region44: #{_run_kernel.1} parent=39 // pred_fallthru
          _
        %s221 = sand.u32 %s30, 1
        %s222 = scalar_lea.sflag [#allocation3], %s221
        %s223 = sand.u32 %s30, 1
        %s224 = smul.addr %s223, 64
        %s225 = scalar_lea.vmem [#allocation2], %s224
        %p226 = pneg %p43
        %p227 = pneg %p40
        %p228 = pneg %p64
        %p229 = pneg %p61
        %p230 = pneg %p85
        %p231 = pneg %p82
        %p232 = pneg %p106
        %p233 = pneg %p103
        %p234 = pneg %p127
        %p235 = pneg %p124
        %p236 = pneg %p153
        %p237 = pneg %p150
        %s238 = sand.u32 %s140, 1
        %s239 = scalar_lea.sflag [#allocation4], %s238
        %s240 = sand.u32 %s140, 1
        %s241 = smul.addr %s240, 16
        %s242 = scalar_lea.vmem [#allocation5], %s241
        %v244 = vld [vmem:[%s1] sm:$0xf]
        %v245 = vld [vmem:[%s1 + $0x4] sm:$0xf]
        %v246 = vld [vmem:[%s1 + $0x8] sm:$0xf]
        %v247 = vld [vmem:[%s1 + $0xc] sm:$0xf]
        %v248 = vld [vmem:[%s1 + $0x10] sm:$0xf]
        %v249 = vld [vmem:[%s1 + $0x14] sm:$0xf]
        %v250 = vld [vmem:[%s1 + $0x18] sm:$0xf]
        %v251 = vld [vmem:[%s1 + $0x1c] sm:$0xf]
        %v252 = vld [vmem:[%s216] sm:$0xff]
        %v253 = vld [vmem:[%s216 + $0x8] sm:$0xff]
        %v254 = vld [vmem:[%s216 + $0x10] sm:$0xff]
        %v255 = vld [vmem:[%s216 + $0x18] sm:$0xff]
        %v256 = vld [vmem:[%s216 + $0x20] sm:$0xff]
        %v257 = vld [vmem:[%s216 + $0x28] sm:$0xff]
        %v258 = vld [vmem:[%s216 + $0x30] sm:$0xff]
        %v259 = vld [vmem:[%s216 + $0x38] sm:$0xff]
        %v260 = vld [vmem:[%s2] sm:$0xff]
        %v261 = vld [vmem:[%s2 + $0x8] sm:$0xff]
        %v262 = vld [vmem:[%s2 + $0x10] sm:$0xff]
        %v263 = vld [vmem:[%s2 + $0x18] sm:$0xff]
        %v264 = vld [vmem:[%s2 + $0x20] sm:$0xff]
        %v265 = vld [vmem:[%s2 + $0x28] sm:$0xff]
        %v266 = vld [vmem:[%s2 + $0x30] sm:$0xff]
        %v267 = vld [vmem:[%s2 + $0x38] sm:$0xff]
        %269 = vset.pattern.permute.xlu0 0
        %270 = vperm.xlu0 %269, %v260
        %v271 = vpop.permute.xlu0 %270
        %274 = vset.pattern.permute.xlu0 0
        %275 = vperm.xlu0 %274, %v261
        %v276 = vpop.permute.xlu0 %275
        %279 = vset.pattern.permute.xlu0 0
        %280 = vperm.xlu0 %279, %v262
        %v281 = vpop.permute.xlu0 %280
        %284 = vset.pattern.permute.xlu0 0
        %285 = vperm.xlu0 %284, %v263
        %v286 = vpop.permute.xlu0 %285
        %289 = vset.pattern.permute.xlu0 0
        %290 = vperm.xlu0 %289, %v264
        %v291 = vpop.permute.xlu0 %290
        %294 = vset.pattern.permute.xlu0 0
        %295 = vperm.xlu0 %294, %v265
        %v296 = vpop.permute.xlu0 %295
        %299 = vset.pattern.permute.xlu0 0
        %300 = vperm.xlu0 %299, %v266
        %v301 = vpop.permute.xlu0 %300
        %304 = vset.pattern.permute.xlu0 0
        %305 = vperm.xlu0 %304, %v267
        %v306 = vpop.permute.xlu0 %305
        %v316 = vunpack.c.l.b16 %v244
        %v317 = vunpack.c.l.b16 %v245
        %v318 = vunpack.c.l.b16 %v246
        %v319 = vunpack.c.l.b16 %v247
        %v320 = vunpack.c.l.b16 %v248
        %v321 = vunpack.c.l.b16 %v249
        %v322 = vunpack.c.l.b16 %v250
        %v323 = vunpack.c.l.b16 %v251
        %v324 = vpack.c.b16 %v317, %v316
        %v325 = vpack.c.b16 %v319, %v318
        %v326 = vpack.c.b16 %v321, %v320
        %v327 = vpack.c.b16 %v323, %v322
        %v336 = vunpack.c.l.b16 %v252
        %v337 = vunpack.c.h.b16 %v252
        %v338 = vunpack.c.l.b16 %v253
        %v339 = vunpack.c.h.b16 %v253
        %v340 = vunpack.c.l.b16 %v254
        %v341 = vunpack.c.h.b16 %v254
        %v342 = vunpack.c.l.b16 %v255
        %v343 = vunpack.c.h.b16 %v255
        %v344 = vunpack.c.l.b16 %v256
        %v345 = vunpack.c.h.b16 %v256
        %v346 = vunpack.c.l.b16 %v257
        %v347 = vunpack.c.h.b16 %v257
        %v348 = vunpack.c.l.b16 %v258
        %v349 = vunpack.c.h.b16 %v258
        %v350 = vunpack.c.l.b16 %v259
        %v351 = vunpack.c.h.b16 %v259
        %v352 = vpack.c.b16 %v338, %v336
        %v353 = vpack.c.b16 %v339, %v337
        %v354 = vpack.c.b16 %v342, %v340
        %v355 = vpack.c.b16 %v343, %v341
        %v356 = vpack.c.b16 %v346, %v344
        %v357 = vpack.c.b16 %v347, %v345
        %v358 = vpack.c.b16 %v350, %v348
        %v359 = vpack.c.b16 %v351, %v349
        %vm368 = vcmask 523264
        %v370 = vsel %vm368, %v324, 0
        %v373 = vsel %vm368, %v325, 0
        %v376 = vsel %vm368, %v326, 0
        %v379 = vsel %vm368, %v327, 0
        %381 = vmatprep.subr.bf16.mxu0 %v353
        %382 = vmatpush1.bf16.msra.mxu0 %v352
        %383 = vmatprep.subr.bf16.mxu0 %v355
        %384 = vmatpush1.bf16.msra.mxu0 %v354
        %385 = vmatprep.subr.bf16.mxu0 %v357
        %386 = vmatpush1.bf16.msra.mxu0 %v356
        %387 = vmatprep.subr.bf16.mxu0 %v359
        %388 = vmatpush1.bf16.msra.mxu0 %v358
        %389 = vmatprep.subr.bf16.mxu0 0
        %390 = vmatpush1.bf16.msra.mxu0 0
        %391 = vmatprep.subr.bf16.mxu0 0
        %392 = vmatpush1.bf16.msra.mxu0 0
        %393 = vmatprep.subr.bf16.mxu0 0
        %394 = vmatpush1.bf16.msra.mxu0 0
        %395 = vmatprep.subr.bf16.mxu0 0
        %396 = vmatpush1.bf16.msra.mxu0 0
        %397 = vmatprep.subr.bf16.mxu0 0
        %398 = vmatpush1.bf16.msra.mxu0 0
        %399 = vmatprep.subr.bf16.mxu0 0
        %400 = vmatpush1.bf16.msra.mxu0 0
        %401 = vmatprep.subr.bf16.mxu0 0
        %402 = vmatpush1.bf16.msra.mxu0 0
        %403 = vmatprep.subr.bf16.mxu0 0
        %404 = vmatpush1.bf16.msra.mxu0 0
        %405 = vmatprep.subr.bf16.mxu0 0
        %406 = vmatpush1.bf16.msra.mxu0 0
        %407 = vmatprep.subr.bf16.mxu0 0
        %408 = vmatpush1.bf16.msra.mxu0 0
        %409 = vmatprep.subr.bf16.mxu0 0
        %410 = vmatpush1.bf16.msra.mxu0 0
        %411 = vmatprep.subr.bf16.mxu0 0
        %412 = vmatpush1.bf16.msra.mxu0 0
        %413 = vmatprep.mubr.bf16.mxu0 0
        %414 = vmatmul.mubr.bf16.gmra.mrb[0].mxu0 %v370
        %v415 = vpop.f32.mrb[0].mxu0
        %v416 = vadd.f32 %v271, %v415
        %v417 = vpop.f32.mrb[0].mxu0
        %v418 = vadd.f32 %v271, %v417
        %v419 = vpop.f32.mrb[0].mxu0
        %v420 = vadd.f32 %v276, %v419
        %v421 = vpop.f32.mrb[0].mxu0
        %v422 = vadd.f32 %v276, %v421
        %423 = vmatprep.mubr.bf16.mxu0 0
        %424 = vmatmul.mubr.bf16.gmra.mrb[0].mxu0 %v373
        %v425 = vpop.f32.mrb[0].mxu0
        %v426 = vadd.f32 %v281, %v425
        %v427 = vpop.f32.mrb[0].mxu0
        %v428 = vadd.f32 %v281, %v427
        %v429 = vpop.f32.mrb[0].mxu0
        %v430 = vadd.f32 %v286, %v429
        %v431 = vpop.f32.mrb[0].mxu0
        %v432 = vadd.f32 %v286, %v431
        %433 = vmatprep.mubr.bf16.mxu0 0
        %434 = vmatmul.mubr.bf16.gmra.mrb[0].mxu0 %v376
        %v435 = vpop.f32.mrb[0].mxu0
        %v436 = vadd.f32 %v291, %v435
        %v437 = vpop.f32.mrb[0].mxu0
        %v438 = vadd.f32 %v291, %v437
        %v439 = vpop.f32.mrb[0].mxu0
        %v440 = vadd.f32 %v296, %v439
        %v441 = vpop.f32.mrb[0].mxu0
        %v442 = vadd.f32 %v296, %v441
        %443 = vmatprep.mubr.bf16.mxu0 0
        %444 = vmatmul.mubr.bf16.gmra.mrb[0].mxu0 %v379
        %v445 = vpop.f32.mrb[0].mxu0
        %v446 = vadd.f32 %v301, %v445
        %v447 = vpop.f32.mrb[0].mxu0
        %v448 = vadd.f32 %v301, %v447
        %v449 = vpop.f32.mrb[0].mxu0
        %v450 = vadd.f32 %v306, %v449
        %v451 = vpop.f32.mrb[0].mxu0
        %v452 = vadd.f32 %v306, %v451
        %453 = vdwg.mxu0
        %v454 = vmax.f32 %v416, 0.0
        %v455 = vmax.f32 %v418, 0.0
        %v456 = vmax.f32 %v420, 0.0
        %v457 = vmax.f32 %v422, 0.0
        %v458 = vmax.f32 %v426, 0.0
        %v459 = vmax.f32 %v428, 0.0
        %v460 = vmax.f32 %v430, 0.0
        %v461 = vmax.f32 %v432, 0.0
        %v462 = vmax.f32 %v436, 0.0
        %v463 = vmax.f32 %v438, 0.0
        %v464 = vmax.f32 %v440, 0.0
        %v465 = vmax.f32 %v442, 0.0
        %v466 = vmax.f32 %v446, 0.0
        %v467 = vmax.f32 %v448, 0.0
        %v468 = vmax.f32 %v450, 0.0
        %v469 = vmax.f32 %v452, 0.0
        %v470 = vld [vmem:[%s3] sm:$0xf]
        %v471 = vpack.c.bf16 %v456, %v454
        %v472 = vpack.c.bf16 %v457, %v455
        %v473 = vpack.c.bf16 %v460, %v458
        %v474 = vpack.c.bf16 %v461, %v459
        %v475 = vpack.c.bf16 %v464, %v462
        %v476 = vpack.c.bf16 %v465, %v463
        %v477 = vpack.c.bf16 %v468, %v466
        %v478 = vpack.c.bf16 %v469, %v467
        %v479 = vld [vmem:[%s4] sm:$0xff]
        %481 = vset.pattern.permute.xlu0 0
        %482 = vperm.xlu0 %481, %v479
        %v483 = vpop.permute.xlu0 %482
        %v486 = vsel %vm368, %v470, 0
        %488 = vmatprep.subr.bf16.mxu0 %v472
        %489 = vmatpush1.bf16.msra.mxu0 %v471
        %490 = vmatprep.subr.bf16.mxu0 %v474
        %491 = vmatpush1.bf16.msra.mxu0 %v473
        %492 = vmatprep.subr.bf16.mxu0 %v476
        %493 = vmatpush1.bf16.msra.mxu0 %v475
        %494 = vmatprep.subr.bf16.mxu0 %v478
        %495 = vmatpush1.bf16.msra.mxu0 %v477
        %496 = vmatprep.subr.bf16.mxu0 0
        %497 = vmatpush1.bf16.msra.mxu0 0
        %498 = vmatprep.subr.bf16.mxu0 0
        %499 = vmatpush1.bf16.msra.mxu0 0
        %500 = vmatprep.subr.bf16.mxu0 0
        %501 = vmatpush1.bf16.msra.mxu0 0
        %502 = vmatprep.subr.bf16.mxu0 0
        %503 = vmatpush1.bf16.msra.mxu0 0
        %504 = vmatprep.subr.bf16.mxu0 0
        %505 = vmatpush1.bf16.msra.mxu0 0
        %506 = vmatprep.subr.bf16.mxu0 0
        %507 = vmatpush1.bf16.msra.mxu0 0
        %508 = vmatprep.subr.bf16.mxu0 0
        %509 = vmatpush1.bf16.msra.mxu0 0
        %510 = vmatprep.subr.bf16.mxu0 0
        %511 = vmatpush1.bf16.msra.mxu0 0
        %512 = vmatprep.subr.bf16.mxu0 0
        %513 = vmatpush1.bf16.msra.mxu0 0
        %514 = vmatprep.subr.bf16.mxu0 0
        %515 = vmatpush1.bf16.msra.mxu0 0
        %516 = vmatprep.subr.bf16.mxu0 0
        %517 = vmatpush1.bf16.msra.mxu0 0
        %518 = vmatprep.subr.bf16.mxu0 0
        %519 = vmatpush1.bf16.msra.mxu0 0
        %520 = vmatprep.mubr.bf16.mxu0 0
        %521 = vmatmul.mubr.bf16.gmra.mrb[0].mxu0 %v486
        %v522 = vpop.f32.mrb[0].mxu0
        %v523 = vadd.f32 %v483, %v522
        %v524 = vpop.f32.mrb[0].mxu0
        %v525 = vadd.f32 %v483, %v524
        %v526 = vpop.f32.mrb[0].mxu0
        %v527 = vpop.f32.mrb[0].mxu0
        %528 = vdwg.mxu0
        %529 = vst [vmem:[%s242] sm:$0xff] %v523
        %530 = vst [vmem:[%s242 + $0x8] sm:$0xff] %v525
        %s531 = sand.u32 %s140, 1
        %s532 = scalar_lea.sflag [#allocation4], %s531
        %s533 = sand.u32 %s140, 1
        %s534 = smul.addr %s533, 16
        %s535 = scalar_lea.vmem [#allocation5], %s534
        // Predicated region
        $region45: #{_run_kernel.1} parent=39 // pred_check
          %p536 = pneg %p150
        $region46: #{_run_kernel.1} parent=39 // pred_check_branch
          %538 = sbr.rel (%p536) target = $region48
        $region47: #{_run_kernel.1} parent=39 // pred_region
          %s540 = ssub.s32 256, 256
          %541 = vsyncadd %s532, %s540
          %s542 = smul.addr %s22, 2
          %s543 = smul.addr %s542, 128
          %s544 = scalar_lea.hbm %s5, %s543
          %s546 = sshll.u32 %s535, 4
          %s547 = int_to_ptr.vmem [resolvable:$true] %s546
          %549 = dma.vmem_to_hbm [thread:$0]  %s547, 256, %s544, %s532
        $region48: #{_run_kernel.1} parent=39 // pred_fallthru
          _
      $region40: #{_run_kernel.1} parent=5 // pred_fallthru
        _
      %p550 = scmp.le.s32.totalorder 2, %s17
      // Predicated region
      $region49: #{_run_kernel.1} parent=5 // pred_check
        %p551 = pneg %p550
      $region50: #{_run_kernel.1} parent=5 // pred_check_branch
        %553 = sbr.rel (%p551) target = $region52
      $region51: #{_run_kernel.1} parent=5 // pred_region
        %s554 = ssub.s32 %s17, 2
        // Predicated region
        $region53: #{_run_kernel.1} parent=51 // pred_check
          %p555 = pneg %p156
        $region54: #{_run_kernel.1} parent=51 // pred_check_branch
          %557 = sbr.rel (%p555) target = $region56
        $region55: #{_run_kernel.1} parent=51 // pred_region
          %s558 = sand.u32 %s141, 1
          %s559 = scalar_lea.sflag [#allocation4], %s558
          %s560 = sand.u32 %s141, 1
          %s561 = smul.addr %s560, 16
          %s562 = scalar_lea.vmem [#allocation5], %s561
          %563 = dma.done %s559, 256
        $region56: #{_run_kernel.1} parent=51 // pred_fallthru
          _
      $region52: #{_run_kernel.1} parent=5 // pred_fallthru
        _
    $region6: #{_run_kernel.1} parent=1 // loop_footer
      %s21 = sadd.s32 1, %s17
    $region7: #{_run_kernel.1} parent=1 // loop_footer_branch
      %16 = sbr.rel target = $region3
    $region8: #{_run_kernel.1} parent=1 // loop_exit
      _
    %564 = vsyncpa [#allocation3], 1
    %s565 = scalar_lea.sflag [#allocation3], 1
    %566 = vsyncpa %s565, 1
    %567 = vsyncpa [#allocation4], 1
    %s568 = scalar_lea.sflag [#allocation4], 1
    %569 = vsyncpa %s568, 1

</llo_original>
